<compile_context>
chip_gen: v6e
topology: v6e:2x2x1
jax: 0.10.0
libtpu: 0.0.40
codegen_flags: <defaults>
</compile_context>

<pallas_src>
import functools
import math

import jax
import jax.numpy as jnp
from jax.experimental import pallas as pl
from jax.experimental.pallas import tpu as pltpu


def _scaled_identity_kernel(x_ref, o_ref, *, scale, seq_op_in_fp32):
    x = x_ref[...]
    if seq_op_in_fp32:
        x = x.astype(jnp.float32)
    # With seq_op_in_fp32=False the scale constant is rounded to the input
    # dtype before the multiply, matching PyTorch's tensor * 0-dim-tensor
    # promotion (result/compute dtype = input dtype).
    o_ref[...] = (x * jnp.asarray(scale, dtype=x.dtype)).astype(o_ref.dtype)


def _pick_lane(n, max_lane=2048):
    """Largest multiple of 128 (<= max_lane) dividing n, or None."""
    for k in range(max_lane // 128, 0, -1):
        cand = 128 * k
        if n % cand == 0:
            return cand
    return None


def scaled_identity(inputs, *, seq_op_in_fp32=True, block_bytes=2 * 1024 * 1024,
                    donate_input=False, vmem_limit_bytes=None):
    """Pallas implementation of ScaledIdentity.forward.

    inputs: [B, S, H] (any float dtype); result has same shape/dtype.
    Scale factor is rsqrt(inputs.shape[2]) (static constant).
    """
    if inputs.ndim < 3:
        raise ValueError("ScaledIdentity expects at least a rank-3 input [B, S, H].")

    orig_shape = inputs.shape
    dtype = inputs.dtype
    scale = 1.0 / math.sqrt(float(orig_shape[2]))

    n = math.prod(orig_shape)
    itemsize = jnp.dtype(dtype).itemsize

    # Lane-dense 2D layout (reshape of a contiguous array is free).
    lane = _pick_lane(n)
    if lane is None:
        # Fallback (tiny/odd H): keep the original trailing dim. A block whose
        # last dim equals the full array extent is always legal; stores may be
        # masked but the result is still correct.
        lane = orig_shape[-1]
    rows = n // lane
    x2d = inputs.reshape(rows, lane)

    # Rows per block: target ~block_bytes per block, second-to-last dim a
    # multiple of 8 (or the full extent when rows < 8).
    tile_r = max(1, block_bytes // (lane * itemsize))
    if rows >= 8:
        tile_r = max(8, min(tile_r, rows))
        tile_r -= tile_r % 8
    else:
        tile_r = rows
    grid = (pl.cdiv(rows, tile_r),)

    kernel = functools.partial(
        _scaled_identity_kernel, scale=scale, seq_op_in_fp32=seq_op_in_fp32
    )

    compiler_kwargs = dict(dimension_semantics=("parallel",))
    if vmem_limit_bytes is not None:
        compiler_kwargs["vmem_limit_bytes"] = vmem_limit_bytes

    out2d = pl.pallas_call(
        kernel,
        out_shape=jax.ShapeDtypeStruct((rows, lane), dtype),
        grid_spec=pltpu.PrefetchScalarGridSpec(
            num_scalar_prefetch=0,
            grid=grid,
            in_specs=[pl.BlockSpec((tile_r, lane), lambda i: (i, 0))],
            out_specs=pl.BlockSpec((tile_r, lane), lambda i: (i, 0)),
        ),
        compiler_params=pltpu.CompilerParams(**compiler_kwargs),
        input_output_aliases=({0: 0} if donate_input else {}),
    )(x2d)

    return out2d.reshape(orig_shape)


if __name__ == "__main__":
    key = jax.random.PRNGKey(0)
    B, S, H = 2, 8, 32
    # bf16 input exercises the fp32-upcast + downcast path (seq_op_in_fp32=True).
    x = jax.random.normal(key, (B, S, H), dtype=jnp.float32).astype(jnp.bfloat16)

    y = jax.block_until_ready(scaled_identity(x, seq_op_in_fp32=True))
    ref = (x.astype(jnp.float32) * (1.0 / math.sqrt(H))).astype(x.dtype)
    assert y.shape == x.shape and y.dtype == x.dtype
    assert jnp.allclose(y.astype(jnp.float32), ref.astype(jnp.float32), atol=1e-2, rtol=1e-2)

    # Exercise the non-lane-dense fallback (total elements not a multiple of 128)
    # and the seq_op_in_fp32=False path.
    H2 = 30
    x2 = jax.random.normal(jax.random.PRNGKey(1), (B, S, H2), dtype=jnp.float32)
    y2 = jax.block_until_ready(scaled_identity(x2, seq_op_in_fp32=False))
    ref2 = x2 * jnp.asarray(1.0 / math.sqrt(H2), dtype=x2.dtype)
    assert y2.shape == x2.shape and y2.dtype == x2.dtype
    assert jnp.allclose(y2, ref2, atol=1e-6, rtol=1e-6)

    # A larger, multi-block shape to exercise the pipelined grid path.
    B3, S3, H3 = 4, 512, 768
    x3 = jax.random.normal(jax.random.PRNGKey(2), (B3, S3, H3), dtype=jnp.bfloat16)
    y3 = jax.block_until_ready(scaled_identity(x3, seq_op_in_fp32=True))
    ref3 = (x3.astype(jnp.float32) * (1.0 / math.sqrt(H3))).astype(x3.dtype)
    assert y3.shape == x3.shape and y3.dtype == x3.dtype
    assert jnp.allclose(y3.astype(jnp.float32), ref3.astype(jnp.float32), atol=1e-2, rtol=1e-2)

    print("KERNEL_OK")
</pallas_src>

<mosaic_0001>
module attributes {stable_mosaic.version = 11 : i64} {
  func.func @_scaled_identity_kernel(%arg0: i32, %arg1: memref<1x512xbf16, #tpu.memory_space<vmem>>, %arg2: memref<1x512xbf16, #tpu.memory_space<vmem>>) attributes {dimension_semantics = [#tpu.dimension_semantics<parallel>], iteration_bounds = array<i64: 1>, scalar_prefetch = 0 : i64, scratch_operands = 0 : i64, tpu.core_type = #tpu.core_type<tc>, window_params = [{transform_indices = @transform_0, window_bounds = array<i64: 1, 512>}, {transform_indices = @transform_1, window_bounds = array<i64: 1, 512>}]} {
    %c0 = arith.constant 0 : index
    %c0_0 = arith.constant 0 : index
    %0 = vector.load %arg1[%c0, %c0_0] : memref<1x512xbf16, #tpu.memory_space<vmem>>, vector<1x512xbf16>
    %1 = arith.extf %0 : vector<1x512xbf16> to vector<1x512xf32>
    %cst = arith.constant 0.176776692 : f32
    %2 = vector.broadcast %cst : f32 to vector<1x512xf32>
    %3 = arith.mulf %1, %2 : vector<1x512xf32>
    %4 = arith.truncf %3 : vector<1x512xf32> to vector<1x512xbf16>
    %c0_1 = arith.constant 0 : index
    %c0_2 = arith.constant 0 : index
    %5 = vector.load %arg2[%c0_1, %c0_2] : memref<1x512xbf16, #tpu.memory_space<vmem>>, vector<1x512xbf16>
    tpu.vector_store %arg2[%c0_1, %c0_2], %4 {strides = array<i32>} : memref<1x512xbf16, #tpu.memory_space<vmem>>, vector<1x512xbf16>,
    return
  }
  func.func @transform_0(%arg0: i32) -> (i32, i32) {
    %c0_i32 = arith.constant 0 : i32
    %c0_i32_0 = arith.constant 0 : i32
    return %arg0, %c0_i32 : i32, i32
  }
  func.func @transform_1(%arg0: i32) -> (i32, i32) {
    %c0_i32 = arith.constant 0 : i32
    %c0_i32_0 = arith.constant 0 : i32
    return %arg0, %c0_i32 : i32, i32
  }
}

</mosaic_0001>

<llo_original>
// kernel: tpu_custom_call.1
$region0: #{tpu_custom_call.1}
  #allocation0 [shape = 'u32[]', space=smem, size = 0x4, offset = 0x4, fixed_abs, tag = 'smem constant byte address 0x4 - core index']
  #allocation1 [shape = 'u32[144,128]{1,0:T(1,128)}', space=vmem, size = 0x12000, scoped, tag = 'internal scratch']
  %s0 = inlined_call_operand.hbm [shape: bf16[1,512], index: 0, kind: input, shape index: {}]
  %s1 = inlined_call_operand.hbm [shape: bf16[1,512], index: 1, kind: output, shape index: {}]
  %s2 = sld [smem:[#allocation0]]
  $region18: #{tpu_custom_call.1} parent=0
    _
  %s4 = ssub.s32 1, %s2
  %s5 = scalar_select 0, %s4, %s2
  $region1: #{tpu_custom_call.1} parent=0
    #allocation2 [shape = 'u8[2048]{0}', space=vmem, size = 0x800, scoped, tag = 'input window, operand 0, single buffered']
    #allocation3 [shape = 's32[1]{0}', space=sflag, size = 0x4, scoped, tag = 'scoped memory for tpu_custom_call.1']
    #allocation4 [shape = 's32[1]{0}', space=sflag, size = 0x4, scoped, tag = 'scoped memory for tpu_custom_call.1']
    #allocation5 [shape = 'u8[2048]{0}', space=vmem, size = 0x800, scoped, tag = 'output window, operand 0, single buffered']
    %6 = vsyncpa [#allocation3], 0
    %7 = vsyncpa [#allocation4], 0
    // Predicated region
    $region2: #{tpu_custom_call.1} parent=1 // pred_check
      _
    $region3: #{tpu_custom_call.1} parent=1 // pred_check_branch
      %9 = sbr.rel (0) target = $region5
    $region4: #{tpu_custom_call.1} parent=1 // pred_region
      %s11 = ssub.s32 64, 64
      %12 = vsyncadd [#allocation3], %s11
      %s14 = sshll.u32 [#allocation2], 4
      %s15 = int_to_ptr.vmem [resolvable:$true] %s14
      %17 = dma.hbm_to_vmem [thread:$0]  %s0, 64, %s15, [#allocation3]
    $region5: #{tpu_custom_call.1} parent=1 // pred_fallthru
      _
    // Predicated region
    $region6: #{tpu_custom_call.1} parent=1 // pred_check
      _
    $region7: #{tpu_custom_call.1} parent=1 // pred_check_branch
      %19 = sbr.rel (0) target = $region9
    $region8: #{tpu_custom_call.1} parent=1 // pred_region
      %20 = dma.done [#allocation3], 64
    $region9: #{tpu_custom_call.1} parent=1 // pred_fallthru
      _
    %v21 = vld [vmem:[#allocation2] sm:$0xf]
    %v22 = vunpack.c.l.bf16 %v21
    %v23 = vmul.f32 %v22, 0.17677669
    %v25 = vlaneseq
    %v26 = vshrl.u32 %v25, 7
    %v27 = vsub.s32 0, %v26
    %v28 = vrot.slane %v23, %v27
    %v29 = vlaneseq
    %v30 = vshrl.u32 %v29, 7
    %v31 = vsub.s32 2, %v30
    %v32 = vrot.slane %v23, %v31
    %v33 = vlaneseq
    %v34 = vshrl.u32 %v33, 7
    %v35 = vsub.s32 4, %v34
    %v36 = vrot.slane %v23, %v35
    %v37 = vlaneseq
    %v38 = vshrl.u32 %v37, 7
    %v39 = vsub.s32 6, %v38
    %v40 = vrot.slane %v23, %v39
    %v45 = vpack.c.bf16 %v28, %v28
    %v46 = vpack.c.bf16 %v32, %v32
    %v47 = vpack.c.bf16 %v36, %v36
    %v48 = vpack.c.bf16 %v40, %v40
    %v53 = vcombine.low %v45, %v46
    %v54 = vcombine.low %v47, %v48
    %v56 = vunpack.c.l.s4 1966171168
    %v57 = vunpack.c.0.s8 %v56
    %v58 = vlaneseq
    %v59 = vshrl.u32 %v58, 7
    %v60 = vsub.s32 %v57, %v59
    %v61 = vrot.slane %v53, %v60
    %v63 = vunpack.c.l.s4 1966171168
    %v64 = vunpack.c.0.s8 %v63
    %v65 = vlaneseq
    %v66 = vshrl.u32 %v65, 7
    %v67 = vsub.s32 %v64, %v66
    %v68 = vrot.slane %v54, %v67
    %v69 = vcombine.low %v61, %v68
    %v71 = vunpack.c.l.s4 1966171168
    %v72 = vunpack.c.0.s8 %v71
    %v73 = vlaneseq
    %v74 = vshrl.u32 %v73, 7
    %v75 = vsub.s32 %v72, %v74
    %v76 = vrot.slane %v69, %v75
    %vm78 = vcmask 1040384
    %vm79 = vsmask.f32 256
    %vm80 = vmand %vm78, %vm79
    %vm81 = vcmask 1041409
    %vm82 = vsmask.f32 1280
    %vm83 = vmand %vm81, %vm82
    %vm84 = vmor %vm83, %vm80
    %vm85 = vcmask 1042434
    %vm86 = vsmask.f32 2304
    %vm87 = vmand %vm85, %vm86
    %vm88 = vmor %vm87, %vm84
    %vm89 = vcmask 1043459
    %vm90 = vsmask.f32 3328
    %vm91 = vmand %vm89, %vm90
    %vm92 = vmor %vm91, %vm88
    %v93 = vld [vmem:[#allocation5] sm:$0xf]
    %v94 = vsel %vm92, %v76, %v93
    %95 = vst [vmem:[#allocation5] sm:$0xf] %v94
    // Predicated region
    $region10: #{tpu_custom_call.1} parent=1 // pred_check
      _
    $region11: #{tpu_custom_call.1} parent=1 // pred_check_branch
      %97 = sbr.rel (0) target = $region13
    $region12: #{tpu_custom_call.1} parent=1 // pred_region
      %s99 = ssub.s32 64, 64
      %100 = vsyncadd [#allocation4], %s99
      %s102 = sshll.u32 [#allocation5], 4
      %s103 = int_to_ptr.vmem [resolvable:$true] %s102
      %105 = dma.vmem_to_hbm [thread:$0]  %s103, 64, %s1, [#allocation4]
    $region13: #{tpu_custom_call.1} parent=1 // pred_fallthru
      _
    // Predicated region
    $region14: #{tpu_custom_call.1} parent=1 // pred_check
      _
    $region15: #{tpu_custom_call.1} parent=1 // pred_check_branch
      %107 = sbr.rel (0) target = $region17
    $region16: #{tpu_custom_call.1} parent=1 // pred_region
      %108 = dma.done [#allocation4], 64
    $region17: #{tpu_custom_call.1} parent=1 // pred_fallthru
      _
    %109 = vsyncpa [#allocation3], 1
    %110 = vsyncpa [#allocation4], 1

</llo_original>
